<compile_context>
chip_gen: v6e
topology: v6e:2x2x1
jax: 0.10.0
libtpu: 0.0.40
codegen_flags: <defaults>
</compile_context>

<pallas_src>
import functools

import jax
import jax.numpy as jnp
from jax.experimental import pallas as pl
from jax.experimental.pallas import tpu as pltpu

EPS = 1e-5
NEG_SLOPE = 0.2


def _leaky_relu(z):
    return jnp.where(z >= 0, z, NEG_SLOPE * z)


def _accumulate_conv(cols_ref, halo_ref, w_ref, acc_ref, *, th, wo):
    """4x4/stride-2 conv for one output-row tile -> acc_ref (th*wo, C_out) f32.

    cols_ref: (1, th*wo, 8*C_in)  both column phases stacked along K   (bf16)
    halo_ref: (1, wo, 8*C_in)     image row (i+1)*th for the dh=1 taps (bf16)
    w_ref:    (2, 8*C_in, C_out)  tap weight matrices, indexed by dh   (bf16)
    """
    a = cols_ref[0]                                    # (th*wo, K8)
    # dh = 0 taps: rows aligned with the output rows.
    acc_ref[...] = jnp.dot(a, w_ref[0], preferred_element_type=jnp.float32)
    # dh = 1 taps: same rows shifted down by one image row; the last output
    # row of the tile uses the halo row.  Row-sliced += into the f32 scratch
    # (offsets are multiples of wo -> sublane-aligned); no concatenates.
    body = (th - 1) * wo
    if body:
        acc_ref[0:body, :] += jnp.dot(
            a[wo:, :], w_ref[1], preferred_element_type=jnp.float32)
    acc_ref[body:th * wo, :] += jnp.dot(
        halo_ref[0], w_ref[1], preferred_element_type=jnp.float32)
    # TODO(synk): if traces show exposed input DMA at small K, bump the cols
    # BlockSpec to pipeline_mode=pl.Buffered(3).


def _conv_fused_kernel(cols_ref, halo_ref, w_ref, o_ref, acc_ref, *,
                       th, wo, normalize):
    """Conv (+ full-image InstanceNorm) + LeakyReLU, lane-dense NCHW store."""
    _accumulate_conv(cols_ref, halo_ref, w_ref, acc_ref, th=th, wo=wo)
    acc = acc_ref[...]
    if normalize:  # only taken when the tile is the whole image (r == 1)
        inv_hw = 1.0 / (th * wo)
        mean = jnp.sum(acc, axis=0, keepdims=True) * inv_hw
        var = jnp.sum(acc * acc, axis=0, keepdims=True) * inv_hw - mean * mean
        inv = jax.lax.rsqrt(jnp.maximum(var, 0.0) + EPS)
        acc = (acc - mean) * inv
    o_ref[0] = _leaky_relu(acc).T.astype(o_ref.dtype)   # (C_out, th*wo)


def _conv_stats_kernel(cols_ref, halo_ref, w_ref, y_ref, s_ref, acc_ref, *,
                       th, wo):
    """Tiled pass 1: conv tile + per-tile (sum, sum_sq) instance-norm partials."""
    _accumulate_conv(cols_ref, halo_ref, w_ref, acc_ref, th=th, wo=wo)
    acc = acc_ref[...]
    # Two direct row stores (no concatenate) of the partial statistics.
    s_ref[0, 0, 0:1, :] = jnp.sum(acc, axis=0, keepdims=True)
    s_ref[0, 0, 1:2, :] = jnp.sum(acc * acc, axis=0, keepdims=True)
    # NHWC-flat store; the NCHW transpose happens in pass 2 (no MXU there).
    y_ref[0] = acc.astype(y_ref.dtype)


def _norm_act_kernel(y_ref, m_ref, v_ref, o_ref):
    """Tiled pass 2: (y - mean) * inv_std, LeakyReLU, NCHW transpose + store."""
    z = (y_ref[0].astype(jnp.float32) - m_ref[0]) * v_ref[0]
    o_ref[0] = _leaky_relu(z).T.astype(o_ref.dtype)


def _tpu_limits():
    """(tile budget, scoped-VMEM limit, TensorCore count) per TPU generation."""
    cap = 64 * 1024 * 1024            # conservative default (v7x per-core VMEM)
    cores = 1
    try:
        info = pltpu.get_tpu_info()
        cap = int(getattr(info, "vmem_capacity_bytes", cap) or cap)
        cores = int(getattr(info, "num_cores", cores) or cores)
    except Exception:
        pass
    budget = min(40 * 1024 * 1024, cap // 2)     # 40 MiB v5e/v6e, 32 MiB v7x
    limit = min((cap * 3) // 4, 100 * 1024 * 1024)
    return budget, limit, cores


def _choose_row_tile(ho, wo, k8, c_out, n_batch, budget_bytes, tc_count,
                     weight_buffers):
    """Largest output-row tile TH with TH | Ho, lane-dense output (TH*Wo % 128
    or full image), and a per-step working set within the budget.  The
    TH-independent weight block is charged once (weight_buffers copies)."""
    cands = [t for t in range(ho, 0, -1)
             if ho % t == 0 and (t == ho or (t * wo) % 128 == 0)]
    if n_batch == 1 and tc_count >= 2:
        # Keep at least two row tiles so both TensorCores get work.
        multi = [t for t in cands if ho // t >= 2]
        if multi:
            cands = multi
    w_bytes = weight_buffers * 2 * k8 * c_out * 2          # (2, K8, C_out) bf16

    def tile_bytes(t):
        thw = t * wo
        return (2 * thw * k8 * 2        # cols block (bf16), double-buffered
                + 2 * wo * k8 * 2       # halo block, double-buffered
                + thw * c_out * 4       # f32 accumulator scratch
                + 2 * thw * c_out * 4   # output block, double-buffered
                + 2 * thw * c_out * 4)  # in-kernel temporaries / transpose

    for t in cands:
        if w_bytes + tile_bytes(t) <= budget_bytes:
            return t
    for t in cands:   # weights alone exceed the budget: still take the
        if tile_bytes(t) <= budget_bytes:   # largest per-tile fit
            return t
    return cands[-1]


@functools.partial(jax.jit, static_argnames=("normalize", "compute_dtype",
                                             "intermediate_dtype", "row_tile"))
def unet_down(x, weight, normalize=True, compute_dtype=jnp.bfloat16,
              intermediate_dtype=jnp.float32, row_tile=None):
    """UNetDown forward: Conv2d(4,2,1,bias=False) [-> InstanceNorm2d] -> LeakyReLU(0.2).

    x:      (N, C_in, H, W)  float32, NCHW
    weight: (C_out, C_in, 4, 4)
    returns (N, C_out, H//2, W//2) float32, NCHW
    """
    # TODO(synk): dropout (train-mode RNG masking) not implemented; the module
    # default dropout=0.0 makes it a no-op.
    n, c_in, h, w = x.shape
    c_out = weight.shape[0]
    assert h % 2 == 0 and w % 2 == 0, "UNetDown expects even spatial dims"
    ho, wo = h // 2, w // 2
    # TODO(synk): tiny bottleneck maps (wo % 8 != 0, e.g. 4x4/2x2) need a
    # dedicated small-map path.
    assert wo % 8 == 0, "this tiling needs output width % 8 == 0"
    hp = ho + 1
    k4 = 4 * c_in
    k8 = 2 * k4
    hw = ho * wo

    # --- pad by 1 px + factor-2 space-to-depth (pure permutation) ------------
    # s2d[n, ph, pw, c*4 + rh*2 + rw] = x_pad[n, c, 2*ph + rh, 2*pw + rw]
    xp = jnp.pad(x, ((0, 0), (0, 0), (1, 1), (1, 1)))
    s2d = xp.reshape(n, c_in, hp, 2, wo + 1, 2)
    s2d = jnp.transpose(s2d, (0, 2, 4, 1, 3, 5)).reshape(n, hp, wo + 1, k4)
    s2d = s2d.astype(compute_dtype)
    # Single combined column buffer: both dw phases stacked along K, so the
    # conv becomes 2 tap matmuls (one per dh) with K = 8*C_in.
    # cols[n, ph*wo + ow, dw*k4 + (c,rh,rw)] = s2d[n, ph, ow + dw, (c,rh,rw)]
    cols = jnp.concatenate([s2d[:, :, :wo, :], s2d[:, :, 1:, :]], axis=-1)
    cols = cols.reshape(n, hp * wo, k8)

    # --- weights -> 2 tap matrices  W[dh][dw*k4 + (c,rh,rw), c_out] -----------
    wt = weight.reshape(c_out, c_in, 2, 2, 2, 2)        # (co, ci, dh, rh, dw, rw)
    wt = jnp.transpose(wt, (2, 4, 1, 3, 5, 0))          # (dh, dw, ci, rh, rw, co)
    wt = wt.reshape(2, k8, c_out).astype(compute_dtype)

    # --- tiling ----------------------------------------------------------------
    budget, vmem_limit, tc_count = _tpu_limits()
    weight_bytes = 2 * k8 * c_out * 2
    # Constant index_map -> the 2nd weight buffer is waste; single-buffer it
    # when it is big enough to matter (not exercised for tiny layers).
    single_buffer_w = weight_bytes >= (2 << 20)
    if row_tile is not None:
        th = int(row_tile)
        assert ho % th == 0 and (th == ho or (th * wo) % 128 == 0), row_tile
    else:
        th = _choose_row_tile(ho, wo, k8, c_out, n, budget, tc_count,
                              weight_buffers=1 if single_buffer_w else 2)
    r = ho // th
    t_hw = th * wo

    cols_spec = pl.BlockSpec((1, t_hw, k8), lambda b, i: (b, i, 0))
    halo_spec = pl.BlockSpec((1, wo, k8), lambda b, i: (b, (i + 1) * th, 0))
    if single_buffer_w:
        w_spec = pl.BlockSpec((2, k8, c_out), lambda b, i: (0, 0, 0),
                              pipeline_mode=pl.Buffered(1))
    else:
        w_spec = pl.BlockSpec((2, k8, c_out), lambda b, i: (0, 0, 0))

    cparams = pltpu.CompilerParams(
        dimension_semantics=("parallel", "parallel"),
        vmem_limit_bytes=int(vmem_limit))

    fused = (not normalize) or (r == 1)
    if fused:
        # Single pass: conv [+ full-image InstanceNorm] + LeakyReLU -> NCHW out.
        out_flat = pl.pallas_call(
            functools.partial(_conv_fused_kernel, th=th, wo=wo,
                              normalize=bool(normalize)),
            out_shape=jax.ShapeDtypeStruct((n, c_out, hw), jnp.float32),
            grid_spec=pltpu.PrefetchScalarGridSpec(
                num_scalar_prefetch=0,
                grid=(n, r),
                in_specs=[cols_spec, halo_spec, w_spec],
                out_specs=pl.BlockSpec((1, c_out, t_hw), lambda b, i: (b, 0, i)),
                scratch_shapes=[pltpu.VMEM((t_hw, c_out), jnp.float32)]),
            compiler_params=cparams,
        )(cols, cols, wt)
    else:
        # Pass 1: conv + per-tile instance-norm partial statistics (NHWC-flat).
        y_conv, stats = pl.pallas_call(
            functools.partial(_conv_stats_kernel, th=th, wo=wo),
            out_shape=(jax.ShapeDtypeStruct((n, hw, c_out), intermediate_dtype),
                       jax.ShapeDtypeStruct((n, r, 2, c_out), jnp.float32)),
            grid_spec=pltpu.PrefetchScalarGridSpec(
                num_scalar_prefetch=0,
                grid=(n, r),
                in_specs=[cols_spec, halo_spec, w_spec],
                out_specs=(pl.BlockSpec((1, t_hw, c_out), lambda b, i: (b, i, 0)),
                           pl.BlockSpec((1, 1, 2, c_out),
                                        lambda b, i: (b, i, 0, 0))),
                scratch_shapes=[pltpu.VMEM((t_hw, c_out), jnp.float32)]),
            compiler_params=cparams,
        )(cols, cols, wt)

        # Tiny per-(n, c) finalize of the statistics in plain XLA.
        s = jnp.sum(stats, axis=1)                      # (N, 2, C_out)
        mean = s[:, 0, :] / hw
        var = jnp.maximum(s[:, 1, :] / hw - mean * mean, 0.0)
        inv = jax.lax.rsqrt(var + EPS)
        mean = mean[:, None, :]                         # (N, 1, C_out)
        inv = inv[:, None, :]

        # Pass 2: normalize + LeakyReLU + NCHW transpose (no MXU work here).
        out_flat = pl.pallas_call(
            _norm_act_kernel,
            out_shape=jax.ShapeDtypeStruct((n, c_out, hw), jnp.float32),
            grid_spec=pltpu.PrefetchScalarGridSpec(
                num_scalar_prefetch=0,
                grid=(n, r),
                in_specs=[pl.BlockSpec((1, t_hw, c_out), lambda b, i: (b, i, 0)),
                          pl.BlockSpec((1, 1, c_out), lambda b, i: (b, 0, 0)),
                          pl.BlockSpec((1, 1, c_out), lambda b, i: (b, 0, 0))],
                out_specs=pl.BlockSpec((1, c_out, t_hw), lambda b, i: (b, 0, i))),
            compiler_params=cparams,
        )(y_conv, mean, inv)

    # (N, C_out, HW) -> (N, C_out, Ho, Wo): contiguous, metadata-only reshape.
    return out_flat.reshape(n, c_out, ho, wo)


def _reference(x, weight, normalize, compute_dtype):
    """Pure-JAX reference with matching bf16 operands / f32 accumulation."""
    y = jax.lax.conv_general_dilated(
        x.astype(compute_dtype), weight.astype(compute_dtype),
        window_strides=(2, 2), padding=((1, 1), (1, 1)),
        dimension_numbers=("NCHW", "OIHW", "NCHW"),
        preferred_element_type=jnp.float32)
    if normalize:
        mean = jnp.mean(y, axis=(2, 3), keepdims=True)
        var = jnp.mean((y - mean) ** 2, axis=(2, 3), keepdims=True)
        y = (y - mean) * jax.lax.rsqrt(var + EPS)
    return jnp.where(y >= 0, y, NEG_SLOPE * y)


if __name__ == "__main__":
    key = jax.random.PRNGKey(0)
    ka, kb, kc, kd = jax.random.split(key, 4)

    # Case 1: default path — whole image fits one tile -> fused conv+IN+LeakyReLU.
    x1 = jax.random.normal(ka, (2, 4, 16, 16), dtype=jnp.float32)
    w1 = jax.random.normal(kb, (8, 4, 4, 4), dtype=jnp.float32) * 0.1
    out1 = jax.block_until_ready(unet_down(x1, w1))
    ref1 = _reference(x1, w1, True, jnp.bfloat16)
    assert out1.shape == (2, 8, 8, 8), out1.shape
    err1 = float(jnp.max(jnp.abs(out1 - ref1)))
    assert err1 < 2e-3, err1

    # Case 2: forced row tiling -> two-pass (conv+stats, then norm+act) path.
    x2 = jax.random.normal(kc, (1, 4, 32, 32), dtype=jnp.float32)
    w2 = jax.random.normal(kd, (16, 4, 4, 4), dtype=jnp.float32) * 0.1
    out2 = jax.block_until_ready(unet_down(x2, w2, row_tile=8))
    ref2 = _reference(x2, w2, True, jnp.bfloat16)
    assert out2.shape == (1, 16, 16, 16), out2.shape
    err2 = float(jnp.max(jnp.abs(out2 - ref2)))
    assert err2 < 2e-3, err2

    # Case 3: normalize=False (first UNetDown layer) -> fused tiled single pass.
    out3 = jax.block_until_ready(unet_down(x2, w2, normalize=False, row_tile=8))
    ref3 = _reference(x2, w2, False, jnp.bfloat16)
    err3 = float(jnp.max(jnp.abs(out3 - ref3)))
    assert err3 < 2e-3, err3

    print("KERNEL_OK")
</pallas_src>

<mosaic_0001>
module attributes {stable_mosaic.version = 11 : i64} {
  func.func @_conv_fused_kernel(%arg0: i32, %arg1: i32, %arg2: memref<1x64x32xbf16, #tpu.memory_space<vmem>>, %arg3: memref<1x8x32xbf16, #tpu.memory_space<vmem>>, %arg4: memref<2x32x8xbf16, #tpu.memory_space<vmem>>, %arg5: memref<1x8x64xf32, #tpu.memory_space<vmem>>, %arg6: memref<64x8xf32, #tpu.memory_space<vmem>>) attributes {dimension_semantics = [#tpu.dimension_semantics<parallel>, #tpu.dimension_semantics<parallel>], iteration_bounds = array<i64: 2, 1>, scalar_prefetch = 0 : i64, scratch_operands = 1 : i64, tpu.core_type = #tpu.core_type<tc>, window_params = [{transform_indices = @transform_0, window_bounds = array<i64: 1, 64, 32>}, {transform_indices = @transform_1, window_bounds = array<i64: 1, 8, 32>}, {pipeline_mode = #tpu.pipeline_mode<synchronous>, transform_indices = @transform_2, window_bounds = array<i64: 2, 32, 8>}, {transform_indices = @transform_3, window_bounds = array<i64: 1, 8, 64>}]} {
    %c0 = arith.constant 0 : index
    %c0_0 = arith.constant 0 : index
    %c0_1 = arith.constant 0 : index
    %0 = vector.load %arg2[%c0, %c0_0, %c0_1] : memref<1x64x32xbf16, #tpu.memory_space<vmem>>, vector<1x64x32xbf16>
    %1 = vector.shape_cast %0 : vector<1x64x32xbf16> to vector<64x32xbf16>
    %c0_2 = arith.constant 0 : index
    %c0_3 = arith.constant 0 : index
    %c0_4 = arith.constant 0 : index
    %2 = vector.load %arg4[%c0_2, %c0_3, %c0_4] : memref<2x32x8xbf16, #tpu.memory_space<vmem>>, vector<1x32x8xbf16>
    %3 = vector.shape_cast %2 : vector<1x32x8xbf16> to vector<32x8xbf16>
    %cst = arith.constant dense<0.000000e+00> : vector<64x8xf32>
    %4 = tpu.matmul %1, %3, %cst {dimension_numbers = #tpu.dot_dimension_numbers<[1], [0], [0], [1], [0, 0, 1, 1], [], []>} : vector<64x32xbf16>, vector<32x8xbf16>, vector<64x8xf32> -> vector<64x8xf32>
    %c0_5 = arith.constant 0 : index
    %c0_6 = arith.constant 0 : index
    %5 = vector.load %arg6[%c0_5, %c0_6] : memref<64x8xf32, #tpu.memory_space<vmem>>, vector<64x8xf32>
    tpu.vector_store %arg6[%c0_5, %c0_6], %4 {strides = array<i32>} : memref<64x8xf32, #tpu.memory_space<vmem>>, vector<64x8xf32>,
    %c0_7 = arith.constant 0 : index
    %c0_8 = arith.constant 0 : index
    %6 = vector.load %arg6[%c0_7, %c0_8] : memref<64x8xf32, #tpu.memory_space<vmem>>, vector<56x8xf32>
    %7 = vector.extract_strided_slice %1 {offsets = [8, 0], sizes = [56, 32], strides = [1, 1]} : vector<64x32xbf16> to vector<56x32xbf16>
    %c1 = arith.constant 1 : index
    %c0_9 = arith.constant 0 : index
    %c0_10 = arith.constant 0 : index
    %8 = vector.load %arg4[%c1, %c0_9, %c0_10] : memref<2x32x8xbf16, #tpu.memory_space<vmem>>, vector<1x32x8xbf16>
    %9 = vector.shape_cast %8 : vector<1x32x8xbf16> to vector<32x8xbf16>
    %cst_11 = arith.constant dense<0.000000e+00> : vector<56x8xf32>
    %10 = tpu.matmul %7, %9, %cst_11 {dimension_numbers = #tpu.dot_dimension_numbers<[1], [0], [0], [1], [0, 0, 1, 1], [], []>} : vector<56x32xbf16>, vector<32x8xbf16>, vector<56x8xf32> -> vector<56x8xf32>
    %11 = arith.addf %6, %10 : vector<56x8xf32>
    %c0_12 = arith.constant 0 : index
    %c0_13 = arith.constant 0 : index
    %12 = vector.load %arg6[%c0_12, %c0_13] : memref<64x8xf32, #tpu.memory_space<vmem>>, vector<56x8xf32>
    tpu.vector_store %arg6[%c0_12, %c0_13], %11 {strides = array<i32>} : memref<64x8xf32, #tpu.memory_space<vmem>>, vector<56x8xf32>,
    %c56 = arith.constant 56 : index
    %c0_14 = arith.constant 0 : index
    %13 = vector.load %arg6[%c56, %c0_14] : memref<64x8xf32, #tpu.memory_space<vmem>>, vector<8x8xf32>
    %c0_15 = arith.constant 0 : index
    %c0_16 = arith.constant 0 : index
    %c0_17 = arith.constant 0 : index
    %14 = vector.load %arg3[%c0_15, %c0_16, %c0_17] : memref<1x8x32xbf16, #tpu.memory_space<vmem>>, vector<1x8x32xbf16>
    %15 = vector.shape_cast %14 : vector<1x8x32xbf16> to vector<8x32xbf16>
    %c1_18 = arith.constant 1 : index
    %c0_19 = arith.constant 0 : index
    %c0_20 = arith.constant 0 : index
    %16 = vector.load %arg4[%c1_18, %c0_19, %c0_20] : memref<2x32x8xbf16, #tpu.memory_space<vmem>>, vector<1x32x8xbf16>
    %17 = vector.shape_cast %16 : vector<1x32x8xbf16> to vector<32x8xbf16>
    %cst_21 = arith.constant dense<0.000000e+00> : vector<8x8xf32>
    %18 = tpu.matmul %15, %17, %cst_21 {dimension_numbers = #tpu.dot_dimension_numbers<[1], [0], [0], [1], [0, 0, 1, 1], [], []>} : vector<8x32xbf16>, vector<32x8xbf16>, vector<8x8xf32> -> vector<8x8xf32>
    %19 = arith.addf %13, %18 : vector<8x8xf32>
    %c56_22 = arith.constant 56 : index
    %c0_23 = arith.constant 0 : index
    %20 = vector.load %arg6[%c56_22, %c0_23] : memref<64x8xf32, #tpu.memory_space<vmem>>, vector<8x8xf32>
    tpu.vector_store %arg6[%c56_22, %c0_23], %19 {strides = array<i32>} : memref<64x8xf32, #tpu.memory_space<vmem>>, vector<8x8xf32>,
    %c0_24 = arith.constant 0 : index
    %c0_25 = arith.constant 0 : index
    %21 = vector.load %arg6[%c0_24, %c0_25] : memref<64x8xf32, #tpu.memory_space<vmem>>, vector<64x8xf32>
    %cst_26 = arith.constant dense<0.000000e+00> : vector<8xf32>
    %22 = vector.multi_reduction <add>, %21, %cst_26 [0] : vector<64x8xf32> to vector<8xf32>
    %23 = vector.shape_cast %22 : vector<8xf32> to vector<1x8xf32>
    %cst_27 = arith.constant 1.562500e-02 : f32
    %24 = vector.broadcast %cst_27 : f32 to vector<1x8xf32>
    %25 = arith.mulf %23, %24 : vector<1x8xf32>
    %26 = arith.mulf %21, %21 : vector<64x8xf32>
    %cst_28 = arith.constant dense<0.000000e+00> : vector<8xf32>
    %27 = vector.multi_reduction <add>, %26, %cst_28 [0] : vector<64x8xf32> to vector<8xf32>
    %28 = vector.shape_cast %27 : vector<8xf32> to vector<1x8xf32>
    %cst_29 = arith.constant 1.562500e-02 : f32
    %29 = vector.broadcast %cst_29 : f32 to vector<1x8xf32>
    %30 = arith.mulf %28, %29 : vector<1x8xf32>
    %31 = arith.mulf %25, %25 : vector<1x8xf32>
    %32 = arith.subf %30, %31 : vector<1x8xf32>
    %cst_30 = arith.constant 0.000000e+00 : f32
    %33 = vector.broadcast %cst_30 : f32 to vector<1x8xf32>
    %34 = arith.maximumf %32, %33 : vector<1x8xf32>
    %cst_31 = arith.constant 9.99999974E-6 : f32
    %35 = vector.broadcast %cst_31 : f32 to vector<1x8xf32>
    %36 = arith.addf %34, %35 : vector<1x8xf32>
    %37 = math.rsqrt %36 : vector<1x8xf32>
    %38 = vector.broadcast %25 : vector<1x8xf32> to vector<64x8xf32>
    %39 = arith.subf %21, %38 : vector<64x8xf32>
    %40 = vector.broadcast %37 : vector<1x8xf32> to vector<64x8xf32>
    %41 = arith.mulf %39, %40 : vector<64x8xf32>
    %cst_32 = arith.constant 0.000000e+00 : f32
    %42 = vector.broadcast %cst_32 : f32 to vector<64x8xf32>
    %43 = arith.cmpf oge, %41, %42 : vector<64x8xf32>
    %cst_33 = arith.constant 2.000000e-01 : f32
    %44 = vector.broadcast %cst_33 : f32 to vector<64x8xf32>
    %45 = arith.mulf %44, %41 : vector<64x8xf32>
    %46 = arith.select %43, %41, %45 : vector<64x8xi1>, vector<64x8xf32>
    %47 = tpu.transpose %46, [1, 0] : vector<64x8xf32> -> vector<8x64xf32>
    %c0_34 = arith.constant 0 : index
    %c0_35 = arith.constant 0 : index
    %c0_36 = arith.constant 0 : index
    %48 = vector.load %arg5[%c0_34, %c0_35, %c0_36] : memref<1x8x64xf32, #tpu.memory_space<vmem>>, vector<1x8x64xf32>
    %49 = vector.shape_cast %48 : vector<1x8x64xf32> to vector<8x64xf32>
    %50 = vector.shape_cast %47 : vector<8x64xf32> to vector<1x8x64xf32>
    tpu.vector_store %arg5[%c0_34, %c0_35, %c0_36], %50 {strides = array<i32>} : memref<1x8x64xf32, #tpu.memory_space<vmem>>, vector<1x8x64xf32>,
    return
  }
  func.func @transform_0(%arg0: i32, %arg1: i32) -> (i32, i32, i32) {
    %c0_i32 = arith.constant 0 : i32
    %c0_i32_0 = arith.constant 0 : i32
    return %arg0, %arg1, %c0_i32 : i32, i32, i32
  }
  func.func @transform_1(%arg0: i32, %arg1: i32) -> (i32, i32, i32) {
    %c1_i32 = arith.constant 1 : i32
    %0 = arith.addi %arg1, %c1_i32 : i32
    %c8_i32 = arith.constant 8 : i32
    %1 = arith.muli %0, %c8_i32 : i32
    %c0_i32 = arith.constant 0 : i32
    %c0_i32_0 = arith.constant 0 : i32
    return %arg0, %1, %c0_i32 : i32, i32, i32
  }
  func.func @transform_2(%arg0: i32, %arg1: i32) -> (i32, i32, i32) {
    %c0_i32 = arith.constant 0 : i32
    %c0_i32_0 = arith.constant 0 : i32
    %c0_i32_1 = arith.constant 0 : i32
    %c0_i32_2 = arith.constant 0 : i32
    return %c0_i32, %c0_i32_0, %c0_i32_1 : i32, i32, i32
  }
  func.func @transform_3(%arg0: i32, %arg1: i32) -> (i32, i32, i32) {
    %c0_i32 = arith.constant 0 : i32
    %c0_i32_0 = arith.constant 0 : i32
    return %arg0, %c0_i32, %arg1 : i32, i32, i32
  }
}

</mosaic_0001>

<llo_original>
// kernel: unet_down.1
$region0: #{unet_down.1}
  #allocation0 [shape = 'u32[]', space=smem, size = 0x4, offset = 0x4, fixed_abs, tag = 'smem constant byte address 0x4 - core index']
  #allocation1 [shape = 'u32[144,128]{1,0:T(1,128)}', space=vmem, size = 0x12000, scoped, tag = 'internal scratch']
  #allocation2 [shape = 'f32[64,8]{1,0:T(8,128)}', space=vmem, size = 0x8000, scoped, tag = 'scratch operand']
  %s0 = inlined_call_operand.vmem [shape: bf16[2,72,32], index: 0, kind: input, shape index: {}, may-alias: {0,1}]
  %s1 = inlined_call_operand.vmem [shape: bf16[2,72,32], index: 1, kind: input, shape index: {}, may-alias: {0,1}]
  %s2 = inlined_call_operand.vmem [shape: bf16[2,32,8], index: 2, kind: input, shape index: {}]
  %s3 = inlined_call_operand.vmem [shape: f32[2,8,64], index: 3, kind: output, shape index: {}]
  %s4 = sld [smem:[#allocation0]]
  $region45: #{unet_down.1} parent=0
    _
  %s6 = ssub.s32 1, %s4
  %s7 = scalar_select 0, %s6, %s4
  loop: start=0, step=1, limit=4
  $region2: #{unet_down.1} parent=0 // loop_pre_header
    _
  $region3: #{unet_down.1} parent=0 // loop_header
    %s9 = sphi 0, %s13
    %p10 = scmp.ge.s32.totalorder %s9, 4
    %s16 = sphi 0, %s28
    %s17 = sphi 0, %s24
    %s18 = sphi 0, %s16
    %s19 = sphi 0, %s17
    %s20 = sphi 0, %s18
    %s21 = sphi 0, %s19
    %s33 = sphi 0, %s35
    %s36 = sphi 0, %s33
    %s37 = sphi 0, %s36
    %s53 = sphi 0, %s37
    %s65 = sphi 0, %s67
    %s68 = sphi 0, %s65
    %s69 = sphi 0, %s68
    %s85 = sphi 0, %s69
    %s89 = sphi 0, %s89
    %s91 = sphi 0, %s89
    %s92 = sphi 0, %s91
    %s106 = sphi 0, %s92
    %s114 = sphi 0, %s116
    %s117 = sphi 0, %s114
    %s118 = sphi 0, %s117
    %s134 = sphi 0, %s118
  $region4: #{unet_down.1} parent=0 // loop_header_branch
    %12 = sbr.rel (%p10) target = $region8
  $region5: #{unet_down.1} parent=0 // loop_body
    %s14 = ssub.s32 %s9, 1
    %s15 = ssub.s32 %s9, 2
    %s22 = sadd.s32 1, %s17
    %p23 = scmp.ge.s32.totalorder %s22, 1
    %s24 = scalar_select %p23, 0, %s22
    %s25 = sadd.s32 1, %s16
    %s26 = scalar_select %p23, %s25, %s16
    %p27 = scmp.ge.s32.totalorder %s26, 2
    %s28 = scalar_select %p27, 0, %s26
    %s29 = ssub.s32 %s16, %s28
    %s30 = ssub.s32 %s17, %s24
    %s31 = sor.u32 %s29, %s30
    %p32 = scmp.eq.s32.totalorder %s31, 0
    %s34 = sadd.s32 %s33, 1
    %s35 = scalar_select %p32, %s33, %s34
    %p38 = pneg %p32
    %p39 = scmp.eq.s32.totalorder %s9, 1
    %p40 = por %p38, %p39
    %p41 = scmp.ne.s32.totalorder %s33, %s36
    %p42 = scmp.eq.s32.totalorder %s9, 0
    %p43 = por %p41, %p42
    %p44 = scmp.ne.s32.totalorder %s33, %s36
    %p45 = scmp.eq.s32.totalorder %s14, 1
    %p46 = por %p44, %p45
    %p47 = scmp.ne.s32.totalorder %s36, %s37
    %p48 = scmp.eq.s32.totalorder %s14, 0
    %p49 = por %p47, %p48
    %p50 = scmp.ne.s32.totalorder %s36, %s37
    %p51 = scmp.eq.s32.totalorder %s15, 1
    %p52 = por %p50, %p51
    %p54 = scmp.ne.s32.totalorder %s37, %s53
    %p55 = scmp.eq.s32.totalorder %s15, 0
    %p56 = por %p54, %p55
    %s57 = sadd.s32 %s17, 1
    %s58 = smul.u32 %s57, 8
    %s59 = sadd.s32 %s24, 1
    %s60 = smul.u32 %s59, 8
    %s61 = ssub.s32 %s16, %s28
    %s62 = ssub.s32 %s58, %s60
    %s63 = sor.u32 %s61, %s62
    %p64 = scmp.eq.s32.totalorder %s63, 0
    %s66 = sadd.s32 %s65, 1
    %s67 = scalar_select %p64, %s65, %s66
    %p70 = pneg %p64
    %p71 = scmp.eq.s32.totalorder %s9, 1
    %p72 = por %p70, %p71
    %p73 = scmp.ne.s32.totalorder %s65, %s68
    %p74 = scmp.eq.s32.totalorder %s9, 0
    %p75 = por %p73, %p74
    %p76 = scmp.ne.s32.totalorder %s65, %s68
    %p77 = scmp.eq.s32.totalorder %s14, 1
    %p78 = por %p76, %p77
    %p79 = scmp.ne.s32.totalorder %s68, %s69
    %p80 = scmp.eq.s32.totalorder %s14, 0
    %p81 = por %p79, %p80
    %p82 = scmp.ne.s32.totalorder %s68, %s69
    %p83 = scmp.eq.s32.totalorder %s15, 1
    %p84 = por %p82, %p83
    %p86 = scmp.ne.s32.totalorder %s69, %s85
    %p87 = scmp.eq.s32.totalorder %s15, 0
    %p88 = por %p86, %p87
    %s90 = sadd.s32 %s89, 1
    %p93 = scmp.eq.s32.totalorder %s9, 1
    %p94 = scmp.ne.s32.totalorder %s89, %s91
    %p95 = scmp.eq.s32.totalorder %s9, 0
    %p96 = por %p94, %p95
    %p97 = scmp.ne.s32.totalorder %s89, %s91
    %p98 = scmp.eq.s32.totalorder %s14, 1
    %p99 = por %p97, %p98
    %p100 = scmp.ne.s32.totalorder %s91, %s92
    %p101 = scmp.eq.s32.totalorder %s14, 0
    %p102 = por %p100, %p101
    %p103 = scmp.ne.s32.totalorder %s91, %s92
    %p104 = scmp.eq.s32.totalorder %s15, 1
    %p105 = por %p103, %p104
    %p107 = scmp.ne.s32.totalorder %s92, %s106
    %p108 = scmp.eq.s32.totalorder %s15, 0
    %p109 = por %p107, %p108
    %s110 = ssub.s32 %s16, %s28
    %s111 = ssub.s32 %s17, %s24
    %s112 = sor.u32 %s110, %s111
    %p113 = scmp.eq.s32.totalorder %s112, 0
    %s115 = sadd.s32 %s114, 1
    %s116 = scalar_select %p113, %s114, %s115
    %p119 = pneg %p113
    %p120 = scmp.eq.s32.totalorder %s9, 1
    %p121 = por %p119, %p120
    %p122 = scmp.ne.s32.totalorder %s114, %s117
    %p123 = scmp.eq.s32.totalorder %s9, 0
    %p124 = por %p122, %p123
    %p125 = scmp.ne.s32.totalorder %s114, %s117
    %p126 = scmp.eq.s32.totalorder %s14, 1
    %p127 = por %p125, %p126
    %p128 = scmp.ne.s32.totalorder %s117, %s118
    %p129 = scmp.eq.s32.totalorder %s14, 0
    %p130 = por %p128, %p129
    %p131 = scmp.ne.s32.totalorder %s117, %s118
    %p132 = scmp.eq.s32.totalorder %s15, 1
    %p133 = por %p131, %p132
    %p135 = scmp.ne.s32.totalorder %s118, %s134
    %p136 = scmp.eq.s32.totalorder %s15, 0
    %p137 = por %p135, %p136
    %p138 = scmp.le.s32.totalorder 1, %s9
    %p139 = scmp.lt.s32.totalorder %s9, 3
    %p140 = pnand %p138, %p139
    %p141 = pneg %p140
    // Predicated region
    $region9: #{unet_down.1} parent=5 // pred_check
      _
    $region10: #{unet_down.1} parent=5 // pred_check_branch
      %143 = sbr.rel (%p140) target = $region12
    $region11: #{unet_down.1} parent=5 // pred_region
      %s144 = ssub.s32 %s9, 1
      // Predicated region
      $region13: #{unet_down.1} parent=11 // pred_check
        %p145 = pneg %p102
      $region14: #{unet_down.1} parent=11 // pred_check_branch
        %147 = sbr.rel (%p145) target = $region16
      $region15: #{unet_down.1} parent=11 // pred_region
        _
      $region16: #{unet_down.1} parent=11 // pred_fallthru
        _
    $region12: #{unet_down.1} parent=5 // pred_fallthru
      _
    %p148 = scmp.lt.s32.totalorder %s9, 2
    // Predicated region
    $region17: #{unet_down.1} parent=5 // pred_check
      %p149 = pneg %p148
    $region18: #{unet_down.1} parent=5 // pred_check_branch
      %151 = sbr.rel (%p149) target = $region20
    $region19: #{unet_down.1} parent=5 // pred_region
      // Predicated region
      $region21: #{unet_down.1} parent=19 // pred_check
        %p152 = pneg %p43
      $region22: #{unet_down.1} parent=19 // pred_check_branch
        %154 = sbr.rel (%p152) target = $region24
      $region23: #{unet_down.1} parent=19 // pred_region
        %s155 = smul.u32 8, %s17
        %s156 = ssub.s32 9, %s155
        %p157 = scmp.lt.s32.totalorder %s156, 8
        %s158 = scalar_select %p157, %s156, 8
        %s159 = smul.u32 64, %s158
        %p160 = scmp.lt.s32.totalorder %s16, 1
        %s161 = scalar_select %p160, %s16, 1
        %p162 = scmp.lt.s32.totalorder %s155, 8
        %s163 = scalar_select %p162, %s155, 8
        %s164 = smul.addr %s161, 9
        %s165 = sadd.s32 %s163, %s164
        %s166 = smul.addr %s165, 4
        %s167 = scalar_lea.vmem %s0, %s166
        %s168 = smul.u32 8, %s17
        %s169 = ssub.s32 9, %s168
        %p170 = scmp.lt.s32.totalorder %s169, 8
        %s171 = scalar_select %p170, %s169, 8
        %s172 = smul.u32 64, %s171
      $region24: #{unet_down.1} parent=19 // pred_fallthru
        _
      // Predicated region
      $region25: #{unet_down.1} parent=19 // pred_check
        %p173 = pneg %p75
      $region26: #{unet_down.1} parent=19 // pred_check_branch
        %175 = sbr.rel (%p173) target = $region28
      $region27: #{unet_down.1} parent=19 // pred_region
        %s176 = sadd.s32 %s17, 1
        %s177 = smul.u32 %s176, 8
        %p178 = scmp.lt.s32.totalorder %s16, 1
        %s179 = scalar_select %p178, %s16, 1
        %p180 = scmp.lt.s32.totalorder %s177, 8
        %s181 = scalar_select %p180, %s177, 8
        %s182 = smul.addr %s179, 9
        %s183 = sadd.s32 %s181, %s182
        %s184 = smul.addr %s183, 4
        %s185 = scalar_lea.vmem %s1, %s184
        %s186 = sadd.s32 %s17, 1
        %s187 = smul.u32 %s186, 8
      $region28: #{unet_down.1} parent=19 // pred_fallthru
        _
    $region20: #{unet_down.1} parent=5 // pred_fallthru
      _
    %p188 = scmp.le.s32.totalorder 1, %s9
    %p189 = scmp.lt.s32.totalorder %s9, 3
    %p190 = pnand %p188, %p189
    %p191 = pneg %p190
    // Predicated region
    $region29: #{unet_down.1} parent=5 // pred_check
      _
    $region30: #{unet_down.1} parent=5 // pred_check_branch
      %193 = sbr.rel (%p190) target = $region32
    $region31: #{unet_down.1} parent=5 // pred_region
      %s194 = ssub.s32 %s9, 1
      %s195 = smul.u32 8, %s19
      %s196 = ssub.s32 9, %s195
      %p197 = scmp.lt.s32.totalorder %s196, 8
      %s198 = scalar_select %p197, %s196, 8
      %s199 = smul.u32 64, %s198
      %p200 = scmp.lt.s32.totalorder %s18, 1
      %s201 = scalar_select %p200, %s18, 1
      %p202 = scmp.lt.s32.totalorder %s195, 8
      %s203 = scalar_select %p202, %s195, 8
      %s204 = smul.addr %s201, 9
      %s205 = sadd.s32 %s203, %s204
      %s206 = smul.addr %s205, 4
      %s207 = scalar_lea.vmem %s0, %s206
      %p208 = pneg %p49
      %p209 = pneg %p46
      %s210 = sadd.s32 %s19, 1
      %s211 = smul.u32 %s210, 8
      %p212 = scmp.lt.s32.totalorder %s18, 1
      %s213 = scalar_select %p212, %s18, 1
      %p214 = scmp.lt.s32.totalorder %s211, 8
      %s215 = scalar_select %p214, %s211, 8
      %s216 = smul.addr %s213, 9
      %s217 = sadd.s32 %s215, %s216
      %s218 = smul.addr %s217, 4
      %s219 = scalar_lea.vmem %s1, %s218
      %p220 = pneg %p81
      %p221 = pneg %p78
      %p222 = pneg %p102
      %p223 = pneg %p99
      %p224 = pneg %p130
      %p225 = pneg %p127
      %p226 = scmp.lt.s32.totalorder %s18, 1
      %s227 = scalar_select %p226, %s18, 1
      %p228 = scmp.lt.s32.totalorder %s19, 0
      %s229 = scalar_select %p228, %s19, 0
      %s230 = sadd.s32 %s229, %s227
      %s231 = smul.addr %s230, 8
      %s232 = scalar_lea.vmem %s3, %s231
      %s233 = smul.u32 8, %s19
      %s234 = ssub.s32 9, %s233
      %p235 = scmp.lt.s32.totalorder %s234, 8
      %s236 = scalar_select %p235, %s234, 8
      %s237 = smul.u32 64, %s236
      %p238 = scmp.lt.s32.totalorder %s18, 1
      %s239 = scalar_select %p238, %s18, 1
      %p240 = scmp.lt.s32.totalorder %s233, 8
      %s241 = scalar_select %p240, %s233, 8
      %s242 = smul.addr %s239, 9
      %s243 = sadd.s32 %s241, %s242
      %s244 = smul.addr %s243, 4
      %s245 = scalar_lea.vmem %s0, %s244
      %s246 = smul.u32 8, %s19
      %s247 = ssub.s32 9, %s246
      %p248 = scmp.lt.s32.totalorder %s247, 8
      %s249 = scalar_select %p248, %s247, 8
      %s250 = smul.u32 64, %s249
      %s251 = sadd.s32 %s19, 1
      %s252 = smul.u32 %s251, 8
      %p253 = scmp.lt.s32.totalorder %s18, 1
      %s254 = scalar_select %p253, %s18, 1
      %p255 = scmp.lt.s32.totalorder %s252, 8
      %s256 = scalar_select %p255, %s252, 8
      %s257 = smul.addr %s254, 9
      %s258 = sadd.s32 %s256, %s257
      %s259 = smul.addr %s258, 4
      %s260 = scalar_lea.vmem %s1, %s259
      %s261 = sadd.s32 %s19, 1
      %s262 = smul.u32 %s261, 8
      %p263 = scmp.lt.s32.totalorder %s18, 1
      %s264 = scalar_select %p263, %s18, 1
      %p265 = scmp.lt.s32.totalorder %s19, 0
      %s266 = scalar_select %p265, %s19, 0
      %s267 = sadd.s32 %s266, %s264
      %s268 = smul.addr %s267, 8
      %s269 = scalar_lea.vmem %s3, %s268
      %v271 = vld [vmem:[%s245] sm:$0xf]
      %v272 = vld [vmem:[%s245 + $0x4] sm:$0xf]
      %v273 = vld [vmem:[%s245 + $0x8] sm:$0xf]
      %v274 = vld [vmem:[%s245 + $0xc] sm:$0xf]
      %v275 = vld [vmem:[%s245 + $0x10] sm:$0xf]
      %v276 = vld [vmem:[%s245 + $0x14] sm:$0xf]
      %v277 = vld [vmem:[%s245 + $0x18] sm:$0xf]
      %v278 = vld [vmem:[%s245 + $0x1c] sm:$0xf]
      %v279 = vld [vmem:[%s2] sm:$0xf]
      %v280 = vld [vmem:[%s2 + $0x4] sm:$0xf]
      %v281 = vld [vmem:[%s2 + $0x8] sm:$0xf]
      %v282 = vld [vmem:[%s2 + $0xc] sm:$0xf]
      %v291 = vunpack.c.l.b16 %v271
      %v292 = vunpack.c.l.b16 %v272
      %v293 = vunpack.c.l.b16 %v273
      %v294 = vunpack.c.l.b16 %v274
      %v295 = vunpack.c.l.b16 %v275
      %v296 = vunpack.c.l.b16 %v276
      %v297 = vunpack.c.l.b16 %v277
      %v298 = vunpack.c.l.b16 %v278
      %v299 = vpack.c.b16 %v292, %v291
      %v300 = vpack.c.b16 %v294, %v293
      %v301 = vpack.c.b16 %v296, %v295
      %v302 = vpack.c.b16 %v298, %v297
      %v307 = vunpack.c.l.b16 %v279
      %v308 = vunpack.c.l.b16 %v280
      %v309 = vunpack.c.l.b16 %v281
      %v310 = vunpack.c.l.b16 %v282
      %v311 = vpack.c.b16 %v308, %v307
      %v312 = vpack.c.b16 %v310, %v309
      %vm315 = vcmask 261120
      %v317 = vsel %vm315, %v299, 0
      %v320 = vsel %vm315, %v300, 0
      %v323 = vsel %vm315, %v301, 0
      %v326 = vsel %vm315, %v302, 0
      %328 = vmatprep.subr.bf16.mxu0 0
      %329 = vmatpush1.bf16.msra.mxu0 0
      %330 = vmatprep.subr.bf16.mxu0 0
      %331 = vmatpush1.bf16.msra.mxu0 0
      %332 = vmatprep.subr.bf16.mxu0 0
      %333 = vmatpush1.bf16.msra.mxu0 0
      %334 = vmatprep.subr.bf16.mxu0 0
      %335 = vmatpush1.bf16.msra.mxu0 0
      %336 = vmatprep.subr.bf16.mxu0 0
      %337 = vmatpush1.bf16.msra.mxu0 0
      %338 = vmatprep.subr.bf16.mxu0 0
      %339 = vmatpush1.bf16.msra.mxu0 0
      %340 = vmatprep.subr.bf16.mxu0 0
      %341 = vmatpush1.bf16.msra.mxu0 %v312
      %342 = vmatprep.subr.bf16.mxu0 0
      %343 = vmatpush1.bf16.msra.mxu0 %v311
      %344 = vmatprep.subr.bf16.mxu0 0
      %345 = vmatpush2.bf16.msra.mxu0 0
      %346 = vmatprep.subr.bf16.mxu0 0
      %347 = vmatpush2.bf16.msra.mxu0 0
      %348 = vmatprep.subr.bf16.mxu0 0
      %349 = vmatpush2.bf16.msra.mxu0 0
      %350 = vmatprep.subr.bf16.mxu0 0
      %351 = vmatpush2.bf16.msra.mxu0 0
      %352 = vmatprep.subr.bf16.mxu0 0
      %353 = vmatpush2.bf16.msra.mxu0 0
      %354 = vmatprep.subr.bf16.mxu0 0
      %355 = vmatpush2.bf16.msra.mxu0 0
      %356 = vmatprep.subr.bf16.mxu0 0
      %357 = vmatpush2.bf16.msra.mxu0 0
      %358 = vmatprep.subr.bf16.mxu0 0
      %359 = vmatpush2.bf16.msra.mxu0 0
      %360 = vmatprep.mubr.bf16.mxu0 0
      %361 = vmatmul.mubr.bf16.gmra.mxu0 %v317
      %v362 = vpop.f32.mrf.mxu0
      %v363 = vadd.f32 0.0, %v362
      %v364 = vpop.f32.mrf.mxu0
      %v365 = vpop.f32.mrf.mxu0
      %v366 = vadd.f32 0.0, %v365
      %v367 = vpop.f32.mrf.mxu0
      %368 = vmatprep.mubr.bf16.mxu0 0
      %369 = vmatmul.mubr.bf16.gmra.mxu0 %v320
      %v370 = vpop.f32.mrf.mxu0
      %v371 = vadd.f32 0.0, %v370
      %v372 = vpop.f32.mrf.mxu0
      %v373 = vpop.f32.mrf.mxu0
      %v374 = vadd.f32 0.0, %v373
      %v375 = vpop.f32.mrf.mxu0
      %376 = vmatprep.mubr.bf16.mxu0 0
      %377 = vmatmul.mubr.bf16.gmra.mxu0 %v323
      %v378 = vpop.f32.mrf.mxu0
      %v379 = vadd.f32 0.0, %v378
      %v380 = vpop.f32.mrf.mxu0
      %v381 = vpop.f32.mrf.mxu0
      %v382 = vadd.f32 0.0, %v381
      %v383 = vpop.f32.mrf.mxu0
      %384 = vmatprep.mubr.bf16.mxu0 0
      %385 = vmatmul.mubr.bf16.gmra.mxu0 %v326
      %v386 = vpop.f32.mrf.mxu0
      %v387 = vadd.f32 0.0, %v386
      %v388 = vpop.f32.mrf.mxu0
      %v389 = vpop.f32.mrf.mxu0
      %v390 = vadd.f32 0.0, %v389
      %v391 = vpop.f32.mrf.mxu0
      %392 = vdwg.mxu0
      %vm393 = vcmask 64512
      %394 = vst.msk [vmem:[#allocation2] sm:$0xff] %vm393, %v363
      %395 = vst.msk [vmem:[#allocation2 + $0x8] sm:$0xff] %vm393, %v366
      %396 = vst.msk [vmem:[#allocation2 + $0x10] sm:$0xff] %vm393, %v371
      %397 = vst.msk [vmem:[#allocation2 + $0x18] sm:$0xff] %vm393, %v374
      %398 = vst.msk [vmem:[#allocation2 + $0x20] sm:$0xff] %vm393, %v379
      %399 = vst.msk [vmem:[#allocation2 + $0x28] sm:$0xff] %vm393, %v382
      %400 = vst.msk [vmem:[#allocation2 + $0x30] sm:$0xff] %vm393, %v387
      %401 = vst.msk [vmem:[#allocation2 + $0x38] sm:$0xff] %vm393, %v390
      %v402 = vld [vmem:[#allocation2] sm:$0xff]
      %v403 = vld [vmem:[#allocation2 + $0x8] sm:$0xff]
      %v404 = vld [vmem:[#allocation2 + $0x10] sm:$0xff]
      %v405 = vld [vmem:[#allocation2 + $0x18] sm:$0xff]
      %v406 = vld [vmem:[#allocation2 + $0x20] sm:$0xff]
      %v407 = vld [vmem:[#allocation2 + $0x28] sm:$0xff]
      %v408 = vld [vmem:[#allocation2 + $0x30] sm:$0xff]
      %s409 = scalar_lea.vmem %s2, 16
      %v410 = vld [vmem:[%s409] sm:$0xf]
      %v411 = vld [vmem:[%s409 + $0x4] sm:$0xf]
      %v412 = vld [vmem:[%s409 + $0x8] sm:$0xf]
      %v413 = vld [vmem:[%s409 + $0xc] sm:$0xf]
      %v414 = vpack.c.b16 %v293, %v292
      %v415 = vpack.c.b16 %v295, %v294
      %v416 = vpack.c.b16 %v297, %v296
      %v417 = vpack.c.b16 %v298, %v298
      %v422 = vunpack.c.l.b16 %v410
      %v423 = vunpack.c.l.b16 %v411
      %v424 = vunpack.c.l.b16 %v412
      %v425 = vunpack.c.l.b16 %v413
      %v426 = vpack.c.b16 %v423, %v422
      %v427 = vpack.c.b16 %v425, %v424
      %v431 = vsel %vm315, %v414, 0
      %v434 = vsel %vm315, %v415, 0
      %v437 = vsel %vm315, %v416, 0
      %v440 = vsel %vm315, %v417, 0
      %442 = vmatprep.subr.bf16.mxu0 0
      %443 = vmatpush1.bf16.msra.mxu0 0
      %444 = vmatprep.subr.bf16.mxu0 0
      %445 = vmatpush1.bf16.msra.mxu0 0
      %446 = vmatprep.subr.bf16.mxu0 0
      %447 = vmatpush1.bf16.msra.mxu0 0
      %448 = vmatprep.subr.bf16.mxu0 0
      %449 = vmatpush1.bf16.msra.mxu0 0
      %450 = vmatprep.subr.bf16.mxu0 0
      %451 = vmatpush1.bf16.msra.mxu0 0
      %452 = vmatprep.subr.bf16.mxu0 0
      %453 = vmatpush1.bf16.msra.mxu0 0
      %454 = vmatprep.subr.bf16.mxu0 0
      %455 = vmatpush1.bf16.msra.mxu0 %v427
      %456 = vmatprep.subr.bf16.mxu0 0
      %457 = vmatpush1.bf16.msra.mxu0 %v426
      %458 = vmatprep.subr.bf16.mxu0 0
      %459 = vmatpush2.bf16.msra.mxu0 0
      %460 = vmatprep.subr.bf16.mxu0 0
      %461 = vmatpush2.bf16.msra.mxu0 0
      %462 = vmatprep.subr.bf16.mxu0 0
      %463 = vmatpush2.bf16.msra.mxu0 0
      %464 = vmatprep.subr.bf16.mxu0 0
      %465 = vmatpush2.bf16.msra.mxu0 0
      %466 = vmatprep.subr.bf16.mxu0 0
      %467 = vmatpush2.bf16.msra.mxu0 0
      %468 = vmatprep.subr.bf16.mxu0 0
      %469 = vmatpush2.bf16.msra.mxu0 0
      %470 = vmatprep.subr.bf16.mxu0 0
      %471 = vmatpush2.bf16.msra.mxu0 0
      %472 = vmatprep.subr.bf16.mxu0 0
      %473 = vmatpush2.bf16.msra.mxu0 0
      %474 = vmatprep.mubr.bf16.mxu0 0
      %475 = vmatmul.mubr.bf16.gmra.mxu0 %v431
      %v476 = vpop.f32.mrf.mxu0
      %v477 = vadd.f32 0.0, %v476
      %v478 = vpop.f32.mrf.mxu0
      %v479 = vpop.f32.mrf.mxu0
      %v480 = vadd.f32 0.0, %v479
      %v481 = vpop.f32.mrf.mxu0
      %482 = vmatprep.mubr.bf16.mxu0 0
      %483 = vmatmul.mubr.bf16.gmra.mxu0 %v434
      %v484 = vpop.f32.mrf.mxu0
      %v485 = vadd.f32 0.0, %v484
      %v486 = vpop.f32.mrf.mxu0
      %v487 = vpop.f32.mrf.mxu0
      %v488 = vadd.f32 0.0, %v487
      %v489 = vpop.f32.mrf.mxu0
      %490 = vmatprep.mubr.bf16.mxu0 0
      %491 = vmatmul.mubr.bf16.gmra.mxu0 %v437
      %v492 = vpop.f32.mrf.mxu0
      %v493 = vadd.f32 0.0, %v492
      %v494 = vpop.f32.mrf.mxu0
      %v495 = vpop.f32.mrf.mxu0
      %v496 = vadd.f32 0.0, %v495
      %v497 = vpop.f32.mrf.mxu0
      %498 = vmatprep.mubr.bf16.mxu0 0
      %499 = vmatmul.mubr.bf16.gmra.mxu0 %v440
      %v500 = vpop.f32.mrf.mxu0
      %v501 = vadd.f32 0.0, %v500
      %v502 = vpop.f32.mrf.mxu0
      %v503 = vpop.f32.mrf.mxu0
      %v504 = vpop.f32.mrf.mxu0
      %505 = vdwg.mxu0
      %v506 = vadd.f32 %v402, %v477
      %v507 = vadd.f32 %v403, %v480
      %v508 = vadd.f32 %v404, %v485
      %v509 = vadd.f32 %v405, %v488
      %v510 = vadd.f32 %v406, %v493
      %v511 = vadd.f32 %v407, %v496
      %v512 = vadd.f32 %v408, %v501
      %513 = vst.msk [vmem:[#allocation2] sm:$0xff] %vm393, %v506
      %514 = vst.msk [vmem:[#allocation2 + $0x8] sm:$0xff] %vm393, %v507
      %515 = vst.msk [vmem:[#allocation2 + $0x10] sm:$0xff] %vm393, %v508
      %516 = vst.msk [vmem:[#allocation2 + $0x18] sm:$0xff] %vm393, %v509
      %517 = vst.msk [vmem:[#allocation2 + $0x20] sm:$0xff] %vm393, %v510
      %518 = vst.msk [vmem:[#allocation2 + $0x28] sm:$0xff] %vm393, %v511
      %519 = vst.msk [vmem:[#allocation2 + $0x30] sm:$0xff] %vm393, %v512
      %v520 = vld [vmem:[#allocation2 + $0x38] sm:$0xff]
      %v521 = vld [vmem:[%s260] sm:$0xf]
      %v522 = vld [vmem:[%s409] sm:$0xf]
      %v523 = vld [vmem:[%s409 + $0x4] sm:$0xf]
      %v524 = vld [vmem:[%s409 + $0x8] sm:$0xf]
      %v525 = vld [vmem:[%s409 + $0xc] sm:$0xf]
      %v530 = vunpack.c.l.b16 %v522
      %v531 = vunpack.c.l.b16 %v523
      %v532 = vunpack.c.l.b16 %v524
      %v533 = vunpack.c.l.b16 %v525
      %v534 = vpack.c.b16 %v531, %v530
      %v535 = vpack.c.b16 %v533, %v532
      %v539 = vsel %vm315, %v521, 0
      %541 = vmatprep.subr.bf16.mxu0 0
      %542 = vmatpush1.bf16.msra.mxu0 0
      %543 = vmatprep.subr.bf16.mxu0 0
      %544 = vmatpush1.bf16.msra.mxu0 0
      %545 = vmatprep.subr.bf16.mxu0 0
      %546 = vmatpush1.bf16.msra.mxu0 0
      %547 = vmatprep.subr.bf16.mxu0 0
      %548 = vmatpush1.bf16.msra.mxu0 0
      %549 = vmatprep.subr.bf16.mxu0 0
      %550 = vmatpush1.bf16.msra.mxu0 0
      %551 = vmatprep.subr.bf16.mxu0 0
      %552 = vmatpush1.bf16.msra.mxu0 0
      %553 = vmatprep.subr.bf16.mxu0 0
      %554 = vmatpush1.bf16.msra.mxu0 %v535
      %555 = vmatprep.subr.bf16.mxu0 0
      %556 = vmatpush1.bf16.msra.mxu0 %v534
      %557 = vmatprep.subr.bf16.mxu0 0
      %558 = vmatpush2.bf16.msra.mxu0 0
      %559 = vmatprep.subr.bf16.mxu0 0
      %560 = vmatpush2.bf16.msra.mxu0 0
      %561 = vmatprep.subr.bf16.mxu0 0
      %562 = vmatpush2.bf16.msra.mxu0 0
      %563 = vmatprep.subr.bf16.mxu0 0
      %564 = vmatpush2.bf16.msra.mxu0 0
      %565 = vmatprep.subr.bf16.mxu0 0
      %566 = vmatpush2.bf16.msra.mxu0 0
      %567 = vmatprep.subr.bf16.mxu0 0
      %568 = vmatpush2.bf16.msra.mxu0 0
      %569 = vmatprep.subr.bf16.mxu0 0
      %570 = vmatpush2.bf16.msra.mxu0 0
      %571 = vmatprep.subr.bf16.mxu0 0
      %572 = vmatpush2.bf16.msra.mxu0 0
      %573 = vmatprep.mubr.bf16.mxu0 0
      %574 = vmatmul.mubr.bf16.gmra.mxu0 %v539
      %v575 = vpop.f32.mrf.mxu0
      %v576 = vadd.f32 0.0, %v575
      %v577 = vpop.f32.mrf.mxu0
      %v578 = vpop.f32.mrf.mxu0
      %v579 = vpop.f32.mrf.mxu0
      %580 = vdwg.mxu0
      %v581 = vadd.f32 %v520, %v576
      %582 = vst.msk [vmem:[#allocation2 + $0x38] sm:$0xff] %vm393, %v581
      %v583 = vld [vmem:[#allocation2] sm:$0xff]
      %v584 = vld [vmem:[#allocation2 + $0x8] sm:$0xff]
      %v585 = vld [vmem:[#allocation2 + $0x10] sm:$0xff]
      %v586 = vld [vmem:[#allocation2 + $0x18] sm:$0xff]
      %v587 = vld [vmem:[#allocation2 + $0x20] sm:$0xff]
      %v588 = vld [vmem:[#allocation2 + $0x28] sm:$0xff]
      %v589 = vld [vmem:[#allocation2 + $0x30] sm:$0xff]
      %v590 = vld [vmem:[#allocation2 + $0x38] sm:$0xff]
      %v591 = vsel %vm393, %v583, 0.0
      %v592 = vsel %vm393, %v584, 0.0
      %v593 = vadd.f32 %v591, %v592
      %v594 = vsel %vm393, %v585, 0.0
      %v595 = vadd.f32 %v593, %v594
      %v596 = vsel %vm393, %v586, 0.0
      %v597 = vadd.f32 %v595, %v596
      %v598 = vsel %vm393, %v587, 0.0
      %v599 = vadd.f32 %v597, %v598
      %v600 = vsel %vm393, %v588, 0.0
      %v601 = vadd.f32 %v599, %v600
      %v602 = vsel %vm393, %v589, 0.0
      %v603 = vadd.f32 %v601, %v602
      %v604 = vsel %vm393, %v590, 0.0
      %v605 = vadd.f32 %v603, %v604
      %v606 = vrot.slane %v605, 4
      %v607 = vadd.f32 %v605, %v606
      %v608 = vrot.slane %v607, 2
      %v609 = vadd.f32 %v607, %v608
      %v610 = vrot.slane %v609, 1
      %v611 = vadd.f32 %v609, %v610
      %v612 = vmul.f32 %v611, 0.015625
      %v613 = vmul.f32 %v583, %v583
      %v614 = vmul.f32 %v584, %v584
      %v615 = vmul.f32 %v585, %v585
      %v616 = vmul.f32 %v586, %v586
      %v617 = vmul.f32 %v587, %v587
      %v618 = vmul.f32 %v588, %v588
      %v619 = vmul.f32 %v589, %v589
      %v620 = vmul.f32 %v590, %v590
      %v621 = vsel %vm393, %v613, 0.0
      %v622 = vsel %vm393, %v614, 0.0
      %v623 = vadd.f32 %v621, %v622
      %v624 = vsel %vm393, %v615, 0.0
      %v625 = vadd.f32 %v623, %v624
      %v626 = vsel %vm393, %v616, 0.0
      %v627 = vadd.f32 %v625, %v626
      %v628 = vsel %vm393, %v617, 0.0
      %v629 = vadd.f32 %v627, %v628
      %v630 = vsel %vm393, %v618, 0.0
      %v631 = vadd.f32 %v629, %v630
      %v632 = vsel %vm393, %v619, 0.0
      %v633 = vadd.f32 %v631, %v632
      %v634 = vsel %vm393, %v620, 0.0
      %v635 = vadd.f32 %v633, %v634
      %v636 = vrot.slane %v635, 4
      %v637 = vadd.f32 %v635, %v636
      %v638 = vrot.slane %v637, 2
      %v639 = vadd.f32 %v637, %v638
      %v640 = vrot.slane %v639, 1
      %v641 = vadd.f32 %v639, %v640
      %v642 = vmul.f32 %v641, 0.015625
      %v643 = vmul.f32 %v612, %v612
      %v644 = vsub.f32 %v642, %v643
      %v645 = vmax.f32 %v644, 0.0
      %v646 = vadd.f32 %v645, 1e-05
      %v647 = vrsqrt.pop %v646
      %v648 = vsub.f32 %v583, %v612
      %v649 = vsub.f32 %v584, %v612
      %v650 = vsub.f32 %v585, %v612
      %v651 = vsub.f32 %v586, %v612
      %v652 = vsub.f32 %v587, %v612
      %v653 = vsub.f32 %v588, %v612
      %v654 = vsub.f32 %v589, %v612
      %v655 = vsub.f32 %v590, %v612
      %v656 = vmul.f32 %v648, %v647
      %v657 = vmul.f32 %v649, %v647
      %v658 = vmul.f32 %v650, %v647
      %v659 = vmul.f32 %v651, %v647
      %v660 = vmul.f32 %v652, %v647
      %v661 = vmul.f32 %v653, %v647
      %v662 = vmul.f32 %v654, %v647
      %v663 = vmul.f32 %v655, %v647
      %vm664 = vcmp.ge.f32.partialorder %v656, 0.0
      %vm665 = vcmp.ge.f32.partialorder %v657, 0.0
      %vm666 = vcmp.ge.f32.partialorder %v658, 0.0
      %vm667 = vcmp.ge.f32.partialorder %v659, 0.0
      %vm668 = vcmp.ge.f32.partialorder %v660, 0.0
      %vm669 = vcmp.ge.f32.partialorder %v661, 0.0
      %vm670 = vcmp.ge.f32.partialorder %v662, 0.0
      %vm671 = vcmp.ge.f32.partialorder %v663, 0.0
      %v672 = vmul.f32 %v656, 0.2
      %v673 = vmul.f32 %v657, 0.2
      %v674 = vmul.f32 %v658, 0.2
      %v675 = vmul.f32 %v659, 0.2
      %v676 = vmul.f32 %v660, 0.2
      %v677 = vmul.f32 %v661, 0.2
      %v678 = vmul.f32 %v662, 0.2
      %v679 = vmul.f32 %v663, 0.2
      %v680 = vsel %vm664, %v656, %v672
      %v681 = vsel %vm665, %v657, %v673
      %v682 = vsel %vm666, %v658, %v674
      %v683 = vsel %vm667, %v659, %v675
      %v684 = vsel %vm668, %v660, %v676
      %v685 = vsel %vm669, %v661, %v677
      %v686 = vsel %vm670, %v662, %v678
      %v687 = vsel %vm671, %v663, %v679
      %688 = vxpose.xlu0.b32.start [1/16] %v680, 128
      %689 = vxpose.xlu0.b32.cont [2/16] %v681, 128
      %690 = vxpose.xlu0.b32.cont [3/16] %v682, 128
      %691 = vxpose.xlu0.b32.cont [4/16] %v683, 128
      %692 = vxpose.xlu0.b32.cont [5/16] %v684, 128
      %693 = vxpose.xlu0.b32.cont [6/16] %v685, 128
      %694 = vxpose.xlu0.b32.cont [7/16] %v686, 128
      %695 = vxpose.xlu0.b32.cont [8/16] %v687, 128
      %696 = vxpose.xlu0.b32.cont [9/16] 0.0, 128
      %697 = vxpose.xlu0.b32.cont [10/16] 0.0, 128
      %698 = vxpose.xlu0.b32.cont [11/16] 0.0, 128
      %699 = vxpose.xlu0.b32.cont [12/16] 0.0, 128
      %700 = vxpose.xlu0.b32.cont [13/16] 0.0, 128
      %701 = vxpose.xlu0.b32.cont [14/16] 0.0, 128
      %702 = vxpose.xlu0.b32.cont [15/16] 0.0, 128
      %703 = vxpose.xlu0.b32.end [16/16] 0.0, 128
      %v704 = vpop.trf.xlu0
      %v705 = vpop.trf.xlu0
      %v706 = vpop.trf.xlu0
      %v707 = vpop.trf.xlu0
      %v708 = vpop.trf.xlu0
      %v709 = vpop.trf.xlu0
      %v710 = vpop.trf.xlu0
      %v711 = vpop.trf.xlu0
      %v712 = vpop.trf.xlu0
      %v713 = vpop.trf.xlu0
      %v714 = vpop.trf.xlu0
      %v715 = vpop.trf.xlu0
      %v716 = vpop.trf.xlu0
      %v717 = vpop.trf.xlu0
      %v718 = vpop.trf.xlu0
      %v719 = vpop.trf.xlu0
      %vm720 = vcmask 523264
      %721 = vst.msk [vmem:[%s269] sm:$0xff] %vm720, %v704
      %p722 = scmp.lt.s32.totalorder %s18, 1
      %s723 = scalar_select %p722, %s18, 1
      %p724 = scmp.lt.s32.totalorder %s19, 0
      %s725 = scalar_select %p724, %s19, 0
      %s726 = sadd.s32 %s725, %s723
      %s727 = smul.addr %s726, 8
      %s728 = scalar_lea.vmem %s3, %s727
      // Predicated region
      $region33: #{unet_down.1} parent=31 // pred_check
        %p729 = pneg %p127
      $region34: #{unet_down.1} parent=31 // pred_check_branch
        %731 = sbr.rel (%p729) target = $region36
      $region35: #{unet_down.1} parent=31 // pred_region
        _
      $region36: #{unet_down.1} parent=31 // pred_fallthru
        _
    $region32: #{unet_down.1} parent=5 // pred_fallthru
      _
    %p732 = scmp.le.s32.totalorder 2, %s9
    // Predicated region
    $region37: #{unet_down.1} parent=5 // pred_check
      %p733 = pneg %p732
    $region38: #{unet_down.1} parent=5 // pred_check_branch
      %735 = sbr.rel (%p733) target = $region40
    $region39: #{unet_down.1} parent=5 // pred_region
      %s736 = ssub.s32 %s9, 2
      // Predicated region
      $region41: #{unet_down.1} parent=39 // pred_check
        %p737 = pneg %p133
      $region42: #{unet_down.1} parent=39 // pred_check_branch
        %739 = sbr.rel (%p737) target = $region44
      $region43: #{unet_down.1} parent=39 // pred_region
        %p740 = scmp.lt.s32.totalorder %s20, 1
        %s741 = scalar_select %p740, %s20, 1
        %p742 = scmp.lt.s32.totalorder %s21, 0
        %s743 = scalar_select %p742, %s21, 0
        %s744 = sadd.s32 %s743, %s741
        %s745 = smul.addr %s744, 8
        %s746 = scalar_lea.vmem %s3, %s745
      $region44: #{unet_down.1} parent=39 // pred_fallthru
        _
    $region40: #{unet_down.1} parent=5 // pred_fallthru
      _
  $region6: #{unet_down.1} parent=0 // loop_footer
    %s13 = sadd.s32 1, %s9
  $region7: #{unet_down.1} parent=0 // loop_footer_branch
    %8 = sbr.rel target = $region3
  $region8: #{unet_down.1} parent=0 // loop_exit
    _

</llo_original>
